<compile_context>
chip_gen: v5e
topology: v5e:2x2
jax: 0.10.0
libtpu: 0.0.40
codegen_flags: <defaults>
</compile_context>

<pallas_src>
import jax
import jax.numpy as jnp
from jax import lax
from jax.experimental import pallas as pl
from jax.experimental.pallas import tpu as pltpu
import numpy as np

NB_ACTIONS = 4

# Contract operand-0 dim 1 with operand-1 dim 1 (i.e. x @ w.T, w @ x.T).
_DOT_DIMS = (((1,), (1,)), ((), ()))


def _linear_kernel(x_ref, w_ref, b_ref, o_ref):
    # x_ref : (TM, latent)          VMEM
    # w_ref : (nb_actions, latent)  VMEM  (original PyTorch layout, no .T)
    # b_ref : (1, nb_actions)       VMEM
    # o_ref : (TM, nb_actions)      VMEM
    acc = lax.dot_general(
        x_ref[...], w_ref[...],
        dimension_numbers=_DOT_DIMS,
        preferred_element_type=jnp.float32,
    )
    o_ref[...] = (acc + b_ref[...].astype(jnp.float32)).astype(o_ref.dtype)


def _linear_kernel_t(x_ref, w_ref, b_ref, o_ref):
    # Lane-dense variant: o = w @ x.T + b  -> (nb_actions, TM)
    # b_ref : (nb_actions, 1)  VMEM
    acc = lax.dot_general(
        w_ref[...], x_ref[...],
        dimension_numbers=_DOT_DIMS,
        preferred_element_type=jnp.float32,
    )
    o_ref[...] = (acc + b_ref[...].astype(jnp.float32)).astype(o_ref.dtype)


def _round_up(v, m):
    return ((v + m - 1) // m) * m


def _pick_block_b(B, target, mult):
    # Cap the tile so the grid has >=2 steps when B allows it (keeps both of
    # v7x's TensorCores busy), rounded to a legal tile multiple, never above
    # `target` (HBM-roofline-sized) and never above the (rounded) batch.
    half = _round_up(pl.cdiv(B, 2), mult)
    bb = max(mult, min(target, half))
    return min(bb, _round_up(B, mult))


def brain_forward(x, weight, bias, *, block_b=4096, force_pallas=False,
                  transposed_out=False):
    """Forward of `brain.fc1`.

    x: (B, latent_size), weight: (nb_actions, latent_size), bias: (nb_actions,)
    Returns (B, nb_actions), or (nb_actions, B) if transposed_out=True.
    """
    B, latent = x.shape
    nb_actions = weight.shape[0]

    # Small / inference-shaped batches: hand back to XLA (fuses with
    # neighbouring ops, no custom-call dispatch).
    if B <= block_b and not force_pallas:
        out = (jnp.dot(x, weight.T, precision=lax.Precision.HIGHEST,
                       preferred_element_type=jnp.float32)
               + bias.astype(jnp.float32)).astype(x.dtype)
        return out.T if transposed_out else out

    # ---- B-tiled Pallas path (replay-buffer / training sized batches) ----
    mult = 128 if transposed_out else 8      # legal tile multiple on that axis
    bb = _pick_block_b(B, block_b, mult)
    grid = (pl.cdiv(B, bb),)

    itemsize = jnp.dtype(x.dtype).itemsize
    cost = pl.CostEstimate(
        flops=2 * B * latent * nb_actions,
        transcendentals=0,
        bytes_accessed=(B * latent + B * nb_actions) * itemsize
        + weight.size * jnp.dtype(weight.dtype).itemsize
        + bias.size * jnp.dtype(bias.dtype).itemsize,
    )

    x_spec = pl.BlockSpec((bb, latent), lambda i: (i, 0))
    w_spec = pl.BlockSpec((nb_actions, latent), lambda i: (0, 0))  # resident
    params = pltpu.CompilerParams(dimension_semantics=("parallel",))

    if transposed_out:
        b2 = bias.reshape(nb_actions, 1)
        return pl.pallas_call(
            _linear_kernel_t,
            out_shape=jax.ShapeDtypeStruct((nb_actions, B), x.dtype),
            grid=grid,
            in_specs=[x_spec, w_spec,
                      pl.BlockSpec((nb_actions, 1), lambda i: (0, 0))],
            out_specs=pl.BlockSpec((nb_actions, bb), lambda i: (0, i)),
            compiler_params=params,
            cost_estimate=cost,
        )(x, weight, b2)

    b2 = bias.reshape(1, nb_actions)
    return pl.pallas_call(
        _linear_kernel,
        out_shape=jax.ShapeDtypeStruct((B, nb_actions), x.dtype),
        grid=grid,
        in_specs=[x_spec, w_spec,
                  pl.BlockSpec((1, nb_actions), lambda i: (0, 0))],
        out_specs=pl.BlockSpec((bb, nb_actions), lambda i: (i, 0)),
        compiler_params=params,
        cost_estimate=cost,
    )(x, weight, b2)


def init_brain_params(key, latent_size, nb_actions):
    """Deterministic init mirroring nn.Linear's default (uniform +/- 1/sqrt(fan_in))."""
    kw, kb = jax.random.split(key)
    bound = 1.0 / np.sqrt(latent_size)
    weight = jax.random.uniform(
        kw, (nb_actions, latent_size), jnp.float32, -bound, bound)
    bias = jax.random.uniform(kb, (nb_actions,), jnp.float32, -bound, bound)
    return weight, bias


if __name__ == "__main__":
    latent_size = 32

    key = jax.random.PRNGKey(0)
    kx, kp, kr, kbig = jax.random.split(key, 4)
    weight, bias = init_brain_params(kp, latent_size, NB_ACTIONS)
    w_np, b_np = np.asarray(weight), np.asarray(bias)

    # 1) Inference-shaped small batch: default path hands back to XLA.
    x_small = jax.random.normal(kx, (8, latent_size), jnp.float32)
    ref_small = np.asarray(x_small) @ w_np.T + b_np
    out_small = jax.block_until_ready(brain_forward(x_small, weight, bias))
    np.testing.assert_allclose(np.asarray(out_small), ref_small,
                               rtol=1e-5, atol=1e-5)

    # Same shape forced through the Pallas kernel (single-block grid).
    out_small_pl = jax.block_until_ready(
        brain_forward(x_small, weight, bias, force_pallas=True))
    np.testing.assert_allclose(np.asarray(out_small_pl), ref_small,
                               rtol=1e-5, atol=1e-5)

    # 2) Ragged batch through the tiled Pallas path (edge-padding check).
    x_rag = jax.random.normal(kr, (300, latent_size), jnp.float32)
    ref_rag = np.asarray(x_rag) @ w_np.T + b_np
    out_rag = jax.block_until_ready(
        brain_forward(x_rag, weight, bias, force_pallas=True))
    np.testing.assert_allclose(np.asarray(out_rag), ref_rag,
                               rtol=1e-5, atol=1e-5)

    # 3) Replay-buffer-sized batch: tiled path with >=2 parallel grid steps,
    #    plus the optional lane-dense (nb_actions, B) output variant.
    x_big = jax.random.normal(kbig, (4500, latent_size), jnp.float32)
    ref_big = np.asarray(x_big) @ w_np.T + b_np
    out_big = jax.block_until_ready(brain_forward(x_big, weight, bias))
    np.testing.assert_allclose(np.asarray(out_big), ref_big,
                               rtol=1e-5, atol=1e-5)

    out_big_t = jax.block_until_ready(
        brain_forward(x_big, weight, bias, transposed_out=True))
    np.testing.assert_allclose(np.asarray(out_big_t), ref_big.T,
                               rtol=1e-5, atol=1e-5)

    print("KERNEL_OK")
</pallas_src>

<mosaic_0001>
module attributes {stable_mosaic.version = 11 : i64} {
  func.func @_linear_kernel(%arg0: i32, %arg1: memref<8x32xf32, #tpu.memory_space<vmem>>, %arg2: memref<4x32xf32, #tpu.memory_space<vmem>>, %arg3: memref<1x4xf32, #tpu.memory_space<vmem>>, %arg4: memref<8x4xf32, #tpu.memory_space<vmem>>) attributes {dimension_semantics = [#tpu.dimension_semantics<parallel>], iteration_bounds = array<i64: 1>, scalar_prefetch = 0 : i64, scratch_operands = 0 : i64, tpu.core_type = #tpu.core_type<tc>, window_params = [{transform_indices = @transform_0, window_bounds = array<i64: 8, 32>}, {pipeline_mode = #tpu.pipeline_mode<synchronous>, transform_indices = @transform_1, window_bounds = array<i64: 4, 32>}, {pipeline_mode = #tpu.pipeline_mode<synchronous>, transform_indices = @transform_2, window_bounds = array<i64: 1, 4>}, {transform_indices = @transform_3, window_bounds = array<i64: 8, 4>}]} {
    %c0 = arith.constant 0 : index
    %c0_0 = arith.constant 0 : index
    %0 = vector.load %arg1[%c0, %c0_0] : memref<8x32xf32, #tpu.memory_space<vmem>>, vector<8x32xf32>
    %c0_1 = arith.constant 0 : index
    %c0_2 = arith.constant 0 : index
    %1 = vector.load %arg2[%c0_1, %c0_2] : memref<4x32xf32, #tpu.memory_space<vmem>>, vector<4x32xf32>
    %cst = arith.constant dense<0.000000e+00> : vector<8x4xf32>
    %2 = tpu.matmul %0, %1, %cst {dimension_numbers = #tpu.dot_dimension_numbers<[1], [1], [0], [0], [0, 0, 1, 0], [], []>} : vector<8x32xf32>, vector<4x32xf32>, vector<8x4xf32> -> vector<8x4xf32>
    %c0_3 = arith.constant 0 : index
    %c0_4 = arith.constant 0 : index
    %3 = vector.load %arg3[%c0_3, %c0_4] : memref<1x4xf32, #tpu.memory_space<vmem>>, vector<1x4xf32>
    %4 = vector.broadcast %3 : vector<1x4xf32> to vector<8x4xf32>
    %5 = arith.addf %2, %4 : vector<8x4xf32>
    %c0_5 = arith.constant 0 : index
    %c0_6 = arith.constant 0 : index
    %6 = vector.load %arg4[%c0_5, %c0_6] : memref<8x4xf32, #tpu.memory_space<vmem>>, vector<8x4xf32>
    tpu.vector_store %arg4[%c0_5, %c0_6], %5 {strides = array<i32>} : memref<8x4xf32, #tpu.memory_space<vmem>>, vector<8x4xf32>,
    return
  }
  func.func @transform_0(%arg0: i32) -> (i32, i32) {
    %c0_i32 = arith.constant 0 : i32
    %c0_i32_0 = arith.constant 0 : i32
    return %arg0, %c0_i32 : i32, i32
  }
  func.func @transform_1(%arg0: i32) -> (i32, i32) {
    %c0_i32 = arith.constant 0 : i32
    %c0_i32_0 = arith.constant 0 : i32
    %c0_i32_1 = arith.constant 0 : i32
    return %c0_i32, %c0_i32_0 : i32, i32
  }
  func.func @transform_2(%arg0: i32) -> (i32, i32) {
    %c0_i32 = arith.constant 0 : i32
    %c0_i32_0 = arith.constant 0 : i32
    %c0_i32_1 = arith.constant 0 : i32
    return %c0_i32, %c0_i32_0 : i32, i32
  }
  func.func @transform_3(%arg0: i32) -> (i32, i32) {
    %c0_i32 = arith.constant 0 : i32
    %c0_i32_0 = arith.constant 0 : i32
    return %arg0, %c0_i32 : i32, i32
  }
}

</mosaic_0001>

<llo_original>
// kernel: tpu_custom_call.1
$region0: #{tpu_custom_call.1}
  #allocation0 [shape = 'u32[]', space=smem, size = 0x4, offset = 0x4, fixed_abs, tag = 'smem constant byte address 0x4 - core index']
  #allocation1 [shape = 'u32[72,128]{1,0:T(1,128)}', space=vmem, size = 0x9000, scoped, tag = 'internal scratch']
  %s0 = inlined_call_operand.hbm [shape: f32[8,32], index: 0, kind: input, shape index: {}]
  %s1 = inlined_call_operand.hbm [shape: f32[4,32], index: 1, kind: input, shape index: {}]
  %s2 = inlined_call_operand.vmem [shape: f32[1,4], index: 2, kind: input, shape index: {}]
  %s3 = inlined_call_operand.vmem [shape: f32[8,4], index: 3, kind: output, shape index: {}]
  %s4 = sld [smem:[#allocation0]]
  $region30: #{tpu_custom_call.1} parent=0
    _
  %s6 = ssub.s32 1, %s4
  %s7 = scalar_select 0, %s6, %s4
  $region1: #{tpu_custom_call.1} parent=0
    #allocation2 [shape = 'u8[4096]{0}', space=vmem, size = 0x1000, scoped, tag = 'input window, operand 0, single buffered']
    #allocation3 [shape = 's32[1]{0}', space=sflag, size = 0x4, scoped, tag = 'scoped memory for tpu_custom_call.1']
    #allocation4 [shape = 'u8[2048]{0}', space=vmem, size = 0x800, scoped, tag = 'input window, operand 1, single buffered']
    #allocation5 [shape = 's32[1]{0}', space=sflag, size = 0x4, scoped, tag = 'scoped memory for tpu_custom_call.1']
    %8 = vsyncpa [#allocation3], 0
    %9 = vsyncpa [#allocation5], 0
    // Predicated region
    $region2: #{tpu_custom_call.1} parent=1 // pred_check
      _
    $region3: #{tpu_custom_call.1} parent=1 // pred_check_branch
      %11 = sbr.rel (0) target = $region5
    $region4: #{tpu_custom_call.1} parent=1 // pred_region
      %13 = vsyncadd [#allocation3], 0
      %s15 = sshll.u32 %s0, 4
      %s16 = int_to_ptr.hbm [resolvable:$true] %s15
      %s17 = sshll.u32 [#allocation2], 4
      %s18 = int_to_ptr.vmem [resolvable:$true] %s17
      %20 = dma.hbm_to_vmem [thread:$0]  %s16, 128, %s18, [#allocation3]
    $region5: #{tpu_custom_call.1} parent=1 // pred_fallthru
      _
    // Predicated region
    $region6: #{tpu_custom_call.1} parent=1 // pred_check
      _
    $region7: #{tpu_custom_call.1} parent=1 // pred_check_branch
      %22 = sbr.rel (0) target = $region9
    $region8: #{tpu_custom_call.1} parent=1 // pred_region
      %24 = vsyncadd [#allocation5], 0
      %s26 = sshll.u32 %s1, 4
      %s27 = int_to_ptr.hbm [resolvable:$true] %s26
      %s28 = sshll.u32 [#allocation4], 4
      %s29 = int_to_ptr.vmem [resolvable:$true] %s28
      %31 = dma.hbm_to_vmem [thread:$0]  %s27, 64, %s29, [#allocation5]
    $region9: #{tpu_custom_call.1} parent=1 // pred_fallthru
      _
    // Predicated region
    $region10: #{tpu_custom_call.1} parent=1 // pred_check
      _
    $region11: #{tpu_custom_call.1} parent=1 // pred_check_branch
      %33 = sbr.rel (0) target = $region13
    $region12: #{tpu_custom_call.1} parent=1 // pred_region
      _
    $region13: #{tpu_custom_call.1} parent=1 // pred_fallthru
      _
    // Predicated region
    $region14: #{tpu_custom_call.1} parent=1 // pred_check
      _
    $region15: #{tpu_custom_call.1} parent=1 // pred_check_branch
      %35 = sbr.rel (0) target = $region17
    $region16: #{tpu_custom_call.1} parent=1 // pred_region
      %37 = dma.done [#allocation3], 128
    $region17: #{tpu_custom_call.1} parent=1 // pred_fallthru
      _
    // Predicated region
    $region18: #{tpu_custom_call.1} parent=1 // pred_check
      _
    $region19: #{tpu_custom_call.1} parent=1 // pred_check_branch
      %39 = sbr.rel (0) target = $region21
    $region20: #{tpu_custom_call.1} parent=1 // pred_region
      %41 = dma.done [#allocation5], 64
    $region21: #{tpu_custom_call.1} parent=1 // pred_fallthru
      _
    %v42 = vld [vmem:[#allocation2] sm:$0xff]
    %v43 = vld [vmem:[#allocation4] sm:$0xf]
    %v44 = vld [vmem:[%s2] sm:$0x1]
    %v46 = vperm.slane %v44, 0
    %vm48 = vcmask 261120
    %v50 = vsel %vm48, %v42, 0
    %v53 = vsel %vm48, %v43, 0
    %55 = vmatpush.xpose.msra.mxu0 0.0
    %56 = vmatpush.xpose.msra.mxu0 0.0
    %57 = vmatpush.xpose.msra.mxu0 0.0
    %58 = vmatpush.xpose.msra.mxu0 0.0
    %59 = vmatpush.xpose.msra.mxu0 0.0
    %60 = vmatpush.xpose.msra.mxu0 0.0
    %61 = vmatpush.xpose.msra.mxu0 0.0
    %62 = vmatpush.xpose.msra.mxu0 0.0
    %63 = vmatpush.xpose.msra.mxu0 0.0
    %64 = vmatpush.xpose.msra.mxu0 0.0
    %65 = vmatpush.xpose.msra.mxu0 0.0
    %66 = vmatpush.xpose.msra.mxu0 0.0
    %67 = vmatpush.xpose.msra.mxu0 0.0
    %68 = vmatpush.xpose.msra.mxu0 0.0
    %69 = vmatpush.xpose.msra.mxu0 0.0
    %70 = vmatpush.xpose.msra.mxu0 %v53
    %71 = vmatmul.f32.gmra.mxu0 %v50
    %v72 = vpop.f32.mrf.mxu0
    %v73 = vadd.f32 %v46, %v72
    %74 = vdwg.mxu0
    %vm75 = vcmask 31744
    %76 = vst.msk [vmem:[%s3] sm:$0xff] %vm75, %v73
    // Predicated region
    $region22: #{tpu_custom_call.1} parent=1 // pred_check
      _
    $region23: #{tpu_custom_call.1} parent=1 // pred_check_branch
      %78 = sbr.rel (0) target = $region25
    $region24: #{tpu_custom_call.1} parent=1 // pred_region
      _
    $region25: #{tpu_custom_call.1} parent=1 // pred_fallthru
      _
    // Predicated region
    $region26: #{tpu_custom_call.1} parent=1 // pred_check
      _
    $region27: #{tpu_custom_call.1} parent=1 // pred_check_branch
      %80 = sbr.rel (0) target = $region29
    $region28: #{tpu_custom_call.1} parent=1 // pred_region
      _
    $region29: #{tpu_custom_call.1} parent=1 // pred_fallthru
      _
    %81 = vsyncpa [#allocation3], 1
    %82 = vsyncpa [#allocation5], 1

</llo_original>
